<compile_context>
chip_gen: v6e
topology: v6e:2x2x1
jax: 0.10.0
libtpu: 0.0.40
codegen_flags: <defaults>
</compile_context>

<pallas_src>
import jax
import jax.numpy as jnp
from jax.experimental import pallas as pl
from jax.experimental.pallas import tpu as pltpu

_LANE = 128


def _round_up(x, m):
    return ((x + m - 1) // m) * m


def _policy_kernel(state_ref, w1_ref, b1_ref, w2_ref, b2_ref, w3_ref, b3_ref,
                   out_ref):
    # State arrives f32; cast to bf16 on the VPU so HBM carries it only once.
    x = state_ref[...].astype(jnp.bfloat16)                       # [tb, in]
    h1 = jnp.dot(x, w1_ref[...], preferred_element_type=jnp.float32)
    h1 = jnp.maximum(h1 + b1_ref[...], 0.0).astype(jnp.bfloat16)  # relu -> bf16
    h2 = jnp.dot(h1, w2_ref[...], preferred_element_type=jnp.float32)
    h2 = jnp.maximum(h2 + b2_ref[...], 0.0).astype(jnp.bfloat16)  # relu -> bf16
    h3 = jnp.dot(h2, w3_ref[...], preferred_element_type=jnp.float32)
    # w3/b3 are zero-padded to 128 output columns -> the padded columns are
    # tanh(0) = 0 and the store is lane-dense (unmasked vst).
    out_ref[...] = jnp.tanh(h3 + b3_ref[...]).astype(out_ref.dtype)


def _reference_forward(state, params):
    """Pure-JAX (f32) reference with the same math (raw f32 params)."""
    h1 = jnp.maximum(state @ params["w1"] + params["b1"], 0.0)
    h2 = jnp.maximum(h1 @ params["w2"] + params["b2"], 0.0)
    return jnp.tanh(h2 @ params["w3"] + params["b3"])


def prepare_policy_params(params):
    """One-time per-model prep: cast weights to bf16, keep biases f32, and
    zero-pad the last layer to 128 output columns for a lane-dense store.

    Call this once and reuse the result across forward calls (avoids per-call
    convert ops / extra weight HBM copies in an actor loop)."""
    num_actions = params["w3"].shape[1]
    pad_n = _round_up(num_actions, _LANE)
    w3 = params["w3"].astype(jnp.bfloat16)
    b3 = params["b3"].astype(jnp.float32)
    if pad_n != num_actions:
        w3 = jnp.pad(w3, ((0, 0), (0, pad_n - num_actions)))
        b3 = jnp.pad(b3, ((0, 0), (0, pad_n - num_actions)))
    return {
        "w1": params["w1"].astype(jnp.bfloat16),
        "b1": params["b1"].astype(jnp.float32),
        "w2": params["w2"].astype(jnp.bfloat16),
        "b2": params["b2"].astype(jnp.float32),
        "w3": w3,
        "b3": b3,
        "num_actions": num_actions,
    }


def policy_network_forward(state, prepped, *, tile_b=512):
    """PolicyNetwork forward via Pallas.

    state:   [batch, num_inputs] f32
    prepped: output of prepare_policy_params()
    returns  [batch, num_actions] f32
    """
    batch, num_inputs = state.shape
    hidden = prepped["w1"].shape[1]
    num_actions = prepped["num_actions"]
    pad_n = prepped["w3"].shape[1]

    # Batch tile: multiple of 8 (sublane), no larger than the 8-rounded batch,
    # and capped so the grid keeps >= 2 steps (v7x megacore: both TCs work).
    tile_b = max(8, min(_round_up(tile_b, 8), _round_up(batch, 8)))
    if _round_up(batch, tile_b) // tile_b < 2 and batch > 8:
        tile_b = max(8, min(tile_b, _round_up(pl.cdiv(batch, 2), 8)))
    b_pad = _round_up(batch, tile_b)
    grid_b = b_pad // tile_b

    state_p = state.astype(jnp.float32)
    if b_pad != batch:
        # Pad only when strictly needed; the padded rows are sliced off below.
        state_p = jnp.pad(state_p, ((0, b_pad - batch), (0, 0)))

    w1, b1 = prepped["w1"], prepped["b1"]
    w2, b2 = prepped["w2"], prepped["b2"]
    w3, b3 = prepped["w3"], prepped["b3"]

    flops = 2 * b_pad * (num_inputs * hidden + hidden * hidden
                         + hidden * pad_n)
    transcendentals = b_pad * pad_n
    bytes_accessed = (state_p.size * 4
                      + (w1.size + w2.size + w3.size) * 2
                      + (b1.size + b2.size + b3.size) * 4
                      + b_pad * pad_n * 4)

    out = pl.pallas_call(
        _policy_kernel,
        out_shape=jax.ShapeDtypeStruct((b_pad, pad_n), jnp.float32),
        grid_spec=pltpu.PrefetchScalarGridSpec(
            num_scalar_prefetch=0,
            grid=(grid_b,),
            in_specs=[
                # state: streamed over the batch grid axis (auto-pipelined),
                # f32 in HBM, cast to bf16 inside the kernel.
                pl.BlockSpec((tile_b, num_inputs), lambda i: (i, 0)),
                # weights / biases: constant index_map -> VMEM-resident.
                pl.BlockSpec((num_inputs, hidden), lambda i: (0, 0)),
                pl.BlockSpec((1, hidden), lambda i: (0, 0)),
                pl.BlockSpec((hidden, hidden), lambda i: (0, 0)),
                pl.BlockSpec((1, hidden), lambda i: (0, 0)),
                pl.BlockSpec((hidden, pad_n), lambda i: (0, 0)),
                pl.BlockSpec((1, pad_n), lambda i: (0, 0)),
            ],
            # lane-dense (tile_b, 128) output tile -> unmasked stores.
            out_specs=pl.BlockSpec((tile_b, pad_n), lambda i: (i, 0)),
        ),
        compiler_params=pltpu.CompilerParams(
            # independent batch tiles -> megacore sharding on v7x.
            dimension_semantics=("parallel",),
        ),
        cost_estimate=pl.CostEstimate(
            flops=flops,
            transcendentals=transcendentals,
            bytes_accessed=bytes_accessed,
        ),
    )(state_p, w1, b1, w2, b2, w3, b3)

    return out[:batch, :num_actions]


def init_policy_params(key, num_inputs, num_actions, hidden_size,
                       init_w=0.003):
    """Mirrors the PyTorch module's init (weights stored as [in, out])."""
    k1w, k1b, k2w, k2b, k3w, k3b = jax.random.split(key, 6)
    bound1 = 1.0 / jnp.sqrt(num_inputs)
    bound2 = 1.0 / jnp.sqrt(hidden_size)
    return {
        "w1": jax.random.uniform(k1w, (num_inputs, hidden_size), jnp.float32,
                                 -bound1, bound1),
        "b1": jax.random.uniform(k1b, (1, hidden_size), jnp.float32,
                                 -bound1, bound1),
        "w2": jax.random.uniform(k2w, (hidden_size, hidden_size), jnp.float32,
                                 -bound2, bound2),
        "b2": jax.random.uniform(k2b, (1, hidden_size), jnp.float32,
                                 -bound2, bound2),
        "w3": jax.random.uniform(k3w, (hidden_size, num_actions), jnp.float32,
                                 -init_w, init_w),
        "b3": jax.random.uniform(k3b, (1, num_actions), jnp.float32,
                                 -init_w, init_w),
    }


if __name__ == "__main__":
    # Small shapes consistent with the module's forward: state [batch, num_inputs].
    # batch=200 is deliberately not a tile multiple to exercise the padding path
    # and the >=2-grid-step clamp; hidden=128 keeps the MXU lane width full.
    batch = 200
    num_inputs = 16
    hidden_size = 128
    num_actions = 8

    key = jax.random.PRNGKey(0)
    key_params, key_state = jax.random.split(key)

    params = init_policy_params(key_params, num_inputs, num_actions,
                                hidden_size)
    state = jax.random.normal(key_state, (batch, num_inputs), jnp.float32)

    prepped = prepare_policy_params(params)          # one-time weight prep
    out = policy_network_forward(state, prepped)     # default tile_b=512
    out = jax.block_until_ready(out)

    ref = _reference_forward(state, params)
    assert out.shape == (batch, num_actions), out.shape
    # bf16 matmul operands with f32 accumulation -> loosened tolerance.
    assert jnp.allclose(out, ref, atol=2e-2, rtol=2e-2), (
        float(jnp.max(jnp.abs(out - ref))))

    print("KERNEL_OK")
</pallas_src>

<mosaic_0001>
module attributes {stable_mosaic.version = 11 : i64} {
  func.func @_policy_kernel(%arg0: i32, %arg1: memref<104x16xf32, #tpu.memory_space<vmem>>, %arg2: memref<16x128xbf16, #tpu.memory_space<vmem>>, %arg3: memref<1x128xf32, #tpu.memory_space<vmem>>, %arg4: memref<128x128xbf16, #tpu.memory_space<vmem>>, %arg5: memref<1x128xf32, #tpu.memory_space<vmem>>, %arg6: memref<128x128xbf16, #tpu.memory_space<vmem>>, %arg7: memref<1x128xf32, #tpu.memory_space<vmem>>, %arg8: memref<104x128xf32, #tpu.memory_space<vmem>>) attributes {dimension_semantics = [#tpu.dimension_semantics<parallel>], iteration_bounds = array<i64: 2>, scalar_prefetch = 0 : i64, scratch_operands = 0 : i64, tpu.core_type = #tpu.core_type<tc>, window_params = [{transform_indices = @transform_0, window_bounds = array<i64: 104, 16>}, {pipeline_mode = #tpu.pipeline_mode<synchronous>, transform_indices = @transform_1, window_bounds = array<i64: 16, 128>}, {pipeline_mode = #tpu.pipeline_mode<synchronous>, transform_indices = @transform_2, window_bounds = array<i64: 1, 128>}, {pipeline_mode = #tpu.pipeline_mode<synchronous>, transform_indices = @transform_3, window_bounds = array<i64: 128, 128>}, {pipeline_mode = #tpu.pipeline_mode<synchronous>, transform_indices = @transform_4, window_bounds = array<i64: 1, 128>}, {pipeline_mode = #tpu.pipeline_mode<synchronous>, transform_indices = @transform_5, window_bounds = array<i64: 128, 128>}, {pipeline_mode = #tpu.pipeline_mode<synchronous>, transform_indices = @transform_6, window_bounds = array<i64: 1, 128>}, {transform_indices = @transform_7, window_bounds = array<i64: 104, 128>}]} {
    %c0 = arith.constant 0 : index
    %c0_0 = arith.constant 0 : index
    %0 = vector.load %arg1[%c0, %c0_0] : memref<104x16xf32, #tpu.memory_space<vmem>>, vector<104x16xf32>
    %1 = arith.truncf %0 : vector<104x16xf32> to vector<104x16xbf16>
    %c0_1 = arith.constant 0 : index
    %c0_2 = arith.constant 0 : index
    %2 = vector.load %arg2[%c0_1, %c0_2] : memref<16x128xbf16, #tpu.memory_space<vmem>>, vector<16x128xbf16>
    %cst = arith.constant dense<0.000000e+00> : vector<104x128xf32>
    %3 = tpu.matmul %1, %2, %cst {dimension_numbers = #tpu.dot_dimension_numbers<[1], [0], [0], [1], [0, 0, 1, 1], [], []>} : vector<104x16xbf16>, vector<16x128xbf16>, vector<104x128xf32> -> vector<104x128xf32>
    %c0_3 = arith.constant 0 : index
    %c0_4 = arith.constant 0 : index
    %4 = vector.load %arg3[%c0_3, %c0_4] : memref<1x128xf32, #tpu.memory_space<vmem>>, vector<1x128xf32>
    %5 = vector.broadcast %4 : vector<1x128xf32> to vector<104x128xf32>
    %6 = arith.addf %3, %5 : vector<104x128xf32>
    %cst_5 = arith.constant 0.000000e+00 : f32
    %7 = vector.broadcast %cst_5 : f32 to vector<104x128xf32>
    %8 = arith.maximumf %6, %7 : vector<104x128xf32>
    %9 = arith.truncf %8 : vector<104x128xf32> to vector<104x128xbf16>
    %c0_6 = arith.constant 0 : index
    %c0_7 = arith.constant 0 : index
    %10 = vector.load %arg4[%c0_6, %c0_7] : memref<128x128xbf16, #tpu.memory_space<vmem>>, vector<128x128xbf16>
    %cst_8 = arith.constant dense<0.000000e+00> : vector<104x128xf32>
    %11 = tpu.matmul %9, %10, %cst_8 {dimension_numbers = #tpu.dot_dimension_numbers<[1], [0], [0], [1], [0, 0, 1, 1], [], []>} : vector<104x128xbf16>, vector<128x128xbf16>, vector<104x128xf32> -> vector<104x128xf32>
    %c0_9 = arith.constant 0 : index
    %c0_10 = arith.constant 0 : index
    %12 = vector.load %arg5[%c0_9, %c0_10] : memref<1x128xf32, #tpu.memory_space<vmem>>, vector<1x128xf32>
    %13 = vector.broadcast %12 : vector<1x128xf32> to vector<104x128xf32>
    %14 = arith.addf %11, %13 : vector<104x128xf32>
    %cst_11 = arith.constant 0.000000e+00 : f32
    %15 = vector.broadcast %cst_11 : f32 to vector<104x128xf32>
    %16 = arith.maximumf %14, %15 : vector<104x128xf32>
    %17 = arith.truncf %16 : vector<104x128xf32> to vector<104x128xbf16>
    %c0_12 = arith.constant 0 : index
    %c0_13 = arith.constant 0 : index
    %18 = vector.load %arg6[%c0_12, %c0_13] : memref<128x128xbf16, #tpu.memory_space<vmem>>, vector<128x128xbf16>
    %cst_14 = arith.constant dense<0.000000e+00> : vector<104x128xf32>
    %19 = tpu.matmul %17, %18, %cst_14 {dimension_numbers = #tpu.dot_dimension_numbers<[1], [0], [0], [1], [0, 0, 1, 1], [], []>} : vector<104x128xbf16>, vector<128x128xbf16>, vector<104x128xf32> -> vector<104x128xf32>
    %c0_15 = arith.constant 0 : index
    %c0_16 = arith.constant 0 : index
    %20 = vector.load %arg7[%c0_15, %c0_16] : memref<1x128xf32, #tpu.memory_space<vmem>>, vector<1x128xf32>
    %21 = vector.broadcast %20 : vector<1x128xf32> to vector<104x128xf32>
    %22 = arith.addf %19, %21 : vector<104x128xf32>
    %23 = math.tanh %22 : vector<104x128xf32>
    %c0_17 = arith.constant 0 : index
    %c0_18 = arith.constant 0 : index
    %24 = vector.load %arg8[%c0_17, %c0_18] : memref<104x128xf32, #tpu.memory_space<vmem>>, vector<104x128xf32>
    tpu.vector_store %arg8[%c0_17, %c0_18], %23 {strides = array<i32>} : memref<104x128xf32, #tpu.memory_space<vmem>>, vector<104x128xf32>,
    return
  }
  func.func @transform_0(%arg0: i32) -> (i32, i32) {
    %c0_i32 = arith.constant 0 : i32
    %c0_i32_0 = arith.constant 0 : i32
    return %arg0, %c0_i32 : i32, i32
  }
  func.func @transform_1(%arg0: i32) -> (i32, i32) {
    %c0_i32 = arith.constant 0 : i32
    %c0_i32_0 = arith.constant 0 : i32
    %c0_i32_1 = arith.constant 0 : i32
    return %c0_i32, %c0_i32_0 : i32, i32
  }
  func.func @transform_2(%arg0: i32) -> (i32, i32) {
    %c0_i32 = arith.constant 0 : i32
    %c0_i32_0 = arith.constant 0 : i32
    %c0_i32_1 = arith.constant 0 : i32
    return %c0_i32, %c0_i32_0 : i32, i32
  }
  func.func @transform_3(%arg0: i32) -> (i32, i32) {
    %c0_i32 = arith.constant 0 : i32
    %c0_i32_0 = arith.constant 0 : i32
    %c0_i32_1 = arith.constant 0 : i32
    return %c0_i32, %c0_i32_0 : i32, i32
  }
  func.func @transform_4(%arg0: i32) -> (i32, i32) {
    %c0_i32 = arith.constant 0 : i32
    %c0_i32_0 = arith.constant 0 : i32
    %c0_i32_1 = arith.constant 0 : i32
    return %c0_i32, %c0_i32_0 : i32, i32
  }
  func.func @transform_5(%arg0: i32) -> (i32, i32) {
    %c0_i32 = arith.constant 0 : i32
    %c0_i32_0 = arith.constant 0 : i32
    %c0_i32_1 = arith.constant 0 : i32
    return %c0_i32, %c0_i32_0 : i32, i32
  }
  func.func @transform_6(%arg0: i32) -> (i32, i32) {
    %c0_i32 = arith.constant 0 : i32
    %c0_i32_0 = arith.constant 0 : i32
    %c0_i32_1 = arith.constant 0 : i32
    return %c0_i32, %c0_i32_0 : i32, i32
  }
  func.func @transform_7(%arg0: i32) -> (i32, i32) {
    %c0_i32 = arith.constant 0 : i32
    %c0_i32_0 = arith.constant 0 : i32
    return %arg0, %c0_i32 : i32, i32
  }
}

</mosaic_0001>

<llo_original>
// kernel: tpu_custom_call.1
$region0: #{tpu_custom_call.1}
  #allocation0 [shape = 'u32[]', space=smem, size = 0x4, offset = 0x4, fixed_abs, tag = 'smem constant byte address 0x4 - core index']
  #allocation1 [shape = 'u32[144,128]{1,0:T(1,128)}', space=vmem, size = 0x12000, scoped, tag = 'internal scratch']
  %s0 = inlined_call_operand.vmem [shape: f32[208,16], index: 0, kind: input, shape index: {}]
  %s1 = inlined_call_operand.vmem [shape: bf16[16,128], index: 1, kind: input, shape index: {}]
  %s2 = inlined_call_operand.vmem [shape: f32[1,128], index: 2, kind: input, shape index: {}]
  %s3 = inlined_call_operand.vmem [shape: bf16[128,128], index: 3, kind: input, shape index: {}]
  %s4 = inlined_call_operand.vmem [shape: f32[1,128], index: 4, kind: input, shape index: {}]
  %s5 = inlined_call_operand.vmem [shape: bf16[128,128], index: 5, kind: input, shape index: {}]
  %s6 = inlined_call_operand.vmem [shape: f32[1,128], index: 6, kind: input, shape index: {}]
  %s7 = inlined_call_operand.hbm [shape: f32[208,128], index: 7, kind: output, shape index: {}]
  %s8 = sld [smem:[#allocation0]]
  $region61: #{tpu_custom_call.1} parent=0
    _
  %s10 = ssub.s32 1, %s8
  %s11 = scalar_select 0, %s10, %s8
  $region1: #{tpu_custom_call.1} parent=0
    #allocation2 [shape = 'u8[106496]{0}', space=vmem, size = 0x1a000, scoped, tag = 'output window, operand 0']
    #allocation3 [shape = 's32[2]{0}', space=sflag, size = 0x8, scoped, tag = 'scoped memory for tpu_custom_call.1']
    %12 = vsyncpa [#allocation3], 0
    %s13 = scalar_lea.sflag [#allocation3], 1
    %14 = vsyncpa %s13, 0
    loop: start=0, step=1, limit=4
    $region2: #{tpu_custom_call.1} parent=1 // loop_pre_header
      _
    $region3: #{tpu_custom_call.1} parent=1 // loop_header
      %s16 = sphi 0, %s20
      %p17 = scmp.ge.s32.totalorder %s16, 4
      %s26 = sphi 0, %s28
      %s29 = sphi 0, %s26
      %s30 = sphi 0, %s29
      %s46 = sphi 0, %s30
      %s50 = sphi 0, %s50
      %s52 = sphi 0, %s50
      %s53 = sphi 0, %s52
      %s67 = sphi 0, %s53
      %s71 = sphi 0, %s71
      %s73 = sphi 0, %s71
      %s74 = sphi 0, %s73
      %s88 = sphi 0, %s74
      %s92 = sphi 0, %s92
      %s94 = sphi 0, %s92
      %s95 = sphi 0, %s94
      %s109 = sphi 0, %s95
      %s113 = sphi 0, %s113
      %s115 = sphi 0, %s113
      %s116 = sphi 0, %s115
      %s130 = sphi 0, %s116
      %s134 = sphi 0, %s134
      %s136 = sphi 0, %s134
      %s137 = sphi 0, %s136
      %s151 = sphi 0, %s137
      %s155 = sphi 0, %s155
      %s157 = sphi 0, %s155
      %s158 = sphi 0, %s157
      %s172 = sphi 0, %s158
      %s178 = sphi 0, %s180
      %s181 = sphi 0, %s178
      %s182 = sphi 0, %s181
      %s198 = sphi 0, %s182
    $region4: #{tpu_custom_call.1} parent=1 // loop_header_branch
      %19 = sbr.rel (%p17) target = $region8
    $region5: #{tpu_custom_call.1} parent=1 // loop_body
      %s21 = ssub.s32 %s16, 1
      %s22 = ssub.s32 %s16, 2
      %s23 = sadd.s32 %s16, 1
      %s24 = ssub.s32 %s16, %s23
      %p25 = scmp.eq.s32.totalorder %s24, 0
      %s27 = sadd.s32 %s26, 1
      %s28 = scalar_select %p25, %s26, %s27
      %p31 = pneg %p25
      %p32 = scmp.eq.s32.totalorder %s16, 1
      %p33 = por %p31, %p32
      %p34 = scmp.ne.s32.totalorder %s26, %s29
      %p35 = scmp.eq.s32.totalorder %s16, 0
      %p36 = por %p34, %p35
      %p37 = scmp.ne.s32.totalorder %s26, %s29
      %p38 = scmp.eq.s32.totalorder %s21, 1
      %p39 = por %p37, %p38
      %p40 = scmp.ne.s32.totalorder %s29, %s30
      %p41 = scmp.eq.s32.totalorder %s21, 0
      %p42 = por %p40, %p41
      %p43 = scmp.ne.s32.totalorder %s29, %s30
      %p44 = scmp.eq.s32.totalorder %s22, 1
      %p45 = por %p43, %p44
      %p47 = scmp.ne.s32.totalorder %s30, %s46
      %p48 = scmp.eq.s32.totalorder %s22, 0
      %p49 = por %p47, %p48
      %s51 = sadd.s32 %s50, 1
      %p54 = scmp.eq.s32.totalorder %s16, 1
      %p55 = scmp.ne.s32.totalorder %s50, %s52
      %p56 = scmp.eq.s32.totalorder %s16, 0
      %p57 = por %p55, %p56
      %p58 = scmp.ne.s32.totalorder %s50, %s52
      %p59 = scmp.eq.s32.totalorder %s21, 1
      %p60 = por %p58, %p59
      %p61 = scmp.ne.s32.totalorder %s52, %s53
      %p62 = scmp.eq.s32.totalorder %s21, 0
      %p63 = por %p61, %p62
      %p64 = scmp.ne.s32.totalorder %s52, %s53
      %p65 = scmp.eq.s32.totalorder %s22, 1
      %p66 = por %p64, %p65
      %p68 = scmp.ne.s32.totalorder %s53, %s67
      %p69 = scmp.eq.s32.totalorder %s22, 0
      %p70 = por %p68, %p69
      %s72 = sadd.s32 %s71, 1
      %p75 = scmp.eq.s32.totalorder %s16, 1
      %p76 = scmp.ne.s32.totalorder %s71, %s73
      %p77 = scmp.eq.s32.totalorder %s16, 0
      %p78 = por %p76, %p77
      %p79 = scmp.ne.s32.totalorder %s71, %s73
      %p80 = scmp.eq.s32.totalorder %s21, 1
      %p81 = por %p79, %p80
      %p82 = scmp.ne.s32.totalorder %s73, %s74
      %p83 = scmp.eq.s32.totalorder %s21, 0
      %p84 = por %p82, %p83
      %p85 = scmp.ne.s32.totalorder %s73, %s74
      %p86 = scmp.eq.s32.totalorder %s22, 1
      %p87 = por %p85, %p86
      %p89 = scmp.ne.s32.totalorder %s74, %s88
      %p90 = scmp.eq.s32.totalorder %s22, 0
      %p91 = por %p89, %p90
      %s93 = sadd.s32 %s92, 1
      %p96 = scmp.eq.s32.totalorder %s16, 1
      %p97 = scmp.ne.s32.totalorder %s92, %s94
      %p98 = scmp.eq.s32.totalorder %s16, 0
      %p99 = por %p97, %p98
      %p100 = scmp.ne.s32.totalorder %s92, %s94
      %p101 = scmp.eq.s32.totalorder %s21, 1
      %p102 = por %p100, %p101
      %p103 = scmp.ne.s32.totalorder %s94, %s95
      %p104 = scmp.eq.s32.totalorder %s21, 0
      %p105 = por %p103, %p104
      %p106 = scmp.ne.s32.totalorder %s94, %s95
      %p107 = scmp.eq.s32.totalorder %s22, 1
      %p108 = por %p106, %p107
      %p110 = scmp.ne.s32.totalorder %s95, %s109
      %p111 = scmp.eq.s32.totalorder %s22, 0
      %p112 = por %p110, %p111
      %s114 = sadd.s32 %s113, 1
      %p117 = scmp.eq.s32.totalorder %s16, 1
      %p118 = scmp.ne.s32.totalorder %s113, %s115
      %p119 = scmp.eq.s32.totalorder %s16, 0
      %p120 = por %p118, %p119
      %p121 = scmp.ne.s32.totalorder %s113, %s115
      %p122 = scmp.eq.s32.totalorder %s21, 1
      %p123 = por %p121, %p122
      %p124 = scmp.ne.s32.totalorder %s115, %s116
      %p125 = scmp.eq.s32.totalorder %s21, 0
      %p126 = por %p124, %p125
      %p127 = scmp.ne.s32.totalorder %s115, %s116
      %p128 = scmp.eq.s32.totalorder %s22, 1
      %p129 = por %p127, %p128
      %p131 = scmp.ne.s32.totalorder %s116, %s130
      %p132 = scmp.eq.s32.totalorder %s22, 0
      %p133 = por %p131, %p132
      %s135 = sadd.s32 %s134, 1
      %p138 = scmp.eq.s32.totalorder %s16, 1
      %p139 = scmp.ne.s32.totalorder %s134, %s136
      %p140 = scmp.eq.s32.totalorder %s16, 0
      %p141 = por %p139, %p140
      %p142 = scmp.ne.s32.totalorder %s134, %s136
      %p143 = scmp.eq.s32.totalorder %s21, 1
      %p144 = por %p142, %p143
      %p145 = scmp.ne.s32.totalorder %s136, %s137
      %p146 = scmp.eq.s32.totalorder %s21, 0
      %p147 = por %p145, %p146
      %p148 = scmp.ne.s32.totalorder %s136, %s137
      %p149 = scmp.eq.s32.totalorder %s22, 1
      %p150 = por %p148, %p149
      %p152 = scmp.ne.s32.totalorder %s137, %s151
      %p153 = scmp.eq.s32.totalorder %s22, 0
      %p154 = por %p152, %p153
      %s156 = sadd.s32 %s155, 1
      %p159 = scmp.eq.s32.totalorder %s16, 1
      %p160 = scmp.ne.s32.totalorder %s155, %s157
      %p161 = scmp.eq.s32.totalorder %s16, 0
      %p162 = por %p160, %p161
      %p163 = scmp.ne.s32.totalorder %s155, %s157
      %p164 = scmp.eq.s32.totalorder %s21, 1
      %p165 = por %p163, %p164
      %p166 = scmp.ne.s32.totalorder %s157, %s158
      %p167 = scmp.eq.s32.totalorder %s21, 0
      %p168 = por %p166, %p167
      %p169 = scmp.ne.s32.totalorder %s157, %s158
      %p170 = scmp.eq.s32.totalorder %s22, 1
      %p171 = por %p169, %p170
      %p173 = scmp.ne.s32.totalorder %s158, %s172
      %p174 = scmp.eq.s32.totalorder %s22, 0
      %p175 = por %p173, %p174
      %s176 = ssub.s32 %s16, %s23
      %p177 = scmp.eq.s32.totalorder %s176, 0
      %s179 = sadd.s32 %s178, 1
      %s180 = scalar_select %p177, %s178, %s179
      %p183 = pneg %p177
      %p184 = scmp.eq.s32.totalorder %s16, 1
      %p185 = por %p183, %p184
      %p186 = scmp.ne.s32.totalorder %s178, %s181
      %p187 = scmp.eq.s32.totalorder %s16, 0
      %p188 = por %p186, %p187
      %p189 = scmp.ne.s32.totalorder %s178, %s181
      %p190 = scmp.eq.s32.totalorder %s21, 1
      %p191 = por %p189, %p190
      %p192 = scmp.ne.s32.totalorder %s181, %s182
      %p193 = scmp.eq.s32.totalorder %s21, 0
      %p194 = por %p192, %p193
      %p195 = scmp.ne.s32.totalorder %s181, %s182
      %p196 = scmp.eq.s32.totalorder %s22, 1
      %p197 = por %p195, %p196
      %p199 = scmp.ne.s32.totalorder %s182, %s198
      %p200 = scmp.eq.s32.totalorder %s22, 0
      %p201 = por %p199, %p200
      %p202 = scmp.le.s32.totalorder 1, %s16
      %p203 = scmp.lt.s32.totalorder %s16, 3
      %p204 = pnand %p202, %p203
      %p205 = pneg %p204
      // Predicated region
      $region9: #{tpu_custom_call.1} parent=5 // pred_check
        _
      $region10: #{tpu_custom_call.1} parent=5 // pred_check_branch
        %207 = sbr.rel (%p204) target = $region12
      $region11: #{tpu_custom_call.1} parent=5 // pred_region
        %s208 = ssub.s32 %s16, 1
        // Predicated region
        $region13: #{tpu_custom_call.1} parent=11 // pred_check
          %p209 = pneg %p63
        $region14: #{tpu_custom_call.1} parent=11 // pred_check_branch
          %211 = sbr.rel (%p209) target = $region16
        $region15: #{tpu_custom_call.1} parent=11 // pred_region
          _
        $region16: #{tpu_custom_call.1} parent=11 // pred_fallthru
          _
        // Predicated region
        $region17: #{tpu_custom_call.1} parent=11 // pred_check
          %p212 = pneg %p84
        $region18: #{tpu_custom_call.1} parent=11 // pred_check_branch
          %214 = sbr.rel (%p212) target = $region20
        $region19: #{tpu_custom_call.1} parent=11 // pred_region
          _
        $region20: #{tpu_custom_call.1} parent=11 // pred_fallthru
          _
        // Predicated region
        $region21: #{tpu_custom_call.1} parent=11 // pred_check
          %p215 = pneg %p105
        $region22: #{tpu_custom_call.1} parent=11 // pred_check_branch
          %217 = sbr.rel (%p215) target = $region24
        $region23: #{tpu_custom_call.1} parent=11 // pred_region
          _
        $region24: #{tpu_custom_call.1} parent=11 // pred_fallthru
          _
        // Predicated region
        $region25: #{tpu_custom_call.1} parent=11 // pred_check
          %p218 = pneg %p126
        $region26: #{tpu_custom_call.1} parent=11 // pred_check_branch
          %220 = sbr.rel (%p218) target = $region28
        $region27: #{tpu_custom_call.1} parent=11 // pred_region
          _
        $region28: #{tpu_custom_call.1} parent=11 // pred_fallthru
          _
        // Predicated region
        $region29: #{tpu_custom_call.1} parent=11 // pred_check
          %p221 = pneg %p147
        $region30: #{tpu_custom_call.1} parent=11 // pred_check_branch
          %223 = sbr.rel (%p221) target = $region32
        $region31: #{tpu_custom_call.1} parent=11 // pred_region
          _
        $region32: #{tpu_custom_call.1} parent=11 // pred_fallthru
          _
        // Predicated region
        $region33: #{tpu_custom_call.1} parent=11 // pred_check
          %p224 = pneg %p168
        $region34: #{tpu_custom_call.1} parent=11 // pred_check_branch
          %226 = sbr.rel (%p224) target = $region36
        $region35: #{tpu_custom_call.1} parent=11 // pred_region
          _
        $region36: #{tpu_custom_call.1} parent=11 // pred_fallthru
          _
      $region12: #{tpu_custom_call.1} parent=5 // pred_fallthru
        _
      %p227 = scmp.lt.s32.totalorder %s16, 2
      // Predicated region
      $region37: #{tpu_custom_call.1} parent=5 // pred_check
        %p228 = pneg %p227
      $region38: #{tpu_custom_call.1} parent=5 // pred_check_branch
        %230 = sbr.rel (%p228) target = $region40
      $region39: #{tpu_custom_call.1} parent=5 // pred_region
        // Predicated region
        $region41: #{tpu_custom_call.1} parent=39 // pred_check
          %p231 = pneg %p36
        $region42: #{tpu_custom_call.1} parent=39 // pred_check_branch
          %233 = sbr.rel (%p231) target = $region44
        $region43: #{tpu_custom_call.1} parent=39 // pred_region
          %s234 = smul.u32 13, %s16
          %p235 = scmp.lt.s32.totalorder %s234, 25
          %s236 = scalar_select %p235, %s234, 25
          %s237 = smul.addr %s236, 8
          %s238 = scalar_lea.vmem %s0, %s237
          %s239 = smul.u32 13, %s16
        $region44: #{tpu_custom_call.1} parent=39 // pred_fallthru
          _
      $region40: #{tpu_custom_call.1} parent=5 // pred_fallthru
        _
      %p240 = scmp.le.s32.totalorder 1, %s16
      %p241 = scmp.lt.s32.totalorder %s16, 3
      %p242 = pnand %p240, %p241
      %p243 = pneg %p242
      // Predicated region
      $region45: #{tpu_custom_call.1} parent=5 // pred_check
        _
      $region46: #{tpu_custom_call.1} parent=5 // pred_check_branch
        %245 = sbr.rel (%p242) target = $region48
      $region47: #{tpu_custom_call.1} parent=5 // pred_region
        %s246 = ssub.s32 %s16, 1
        %s247 = smul.u32 13, %s21
        %p248 = scmp.lt.s32.totalorder %s247, 25
        %s249 = scalar_select %p248, %s247, 25
        %s250 = smul.addr %s249, 8
        %s251 = scalar_lea.vmem %s0, %s250
        %p252 = pneg %p42
        %p253 = pneg %p39
        %p254 = pneg %p63
        %p255 = pneg %p60
        %p256 = pneg %p84
        %p257 = pneg %p81
        %p258 = pneg %p105
        %p259 = pneg %p102
        %p260 = pneg %p126
        %p261 = pneg %p123
        %p262 = pneg %p147
        %p263 = pneg %p144
        %p264 = pneg %p168
        %p265 = pneg %p165
        %p266 = pneg %p194
        %p267 = pneg %p191
        %s268 = sand.u32 %s181, 1
        %s269 = scalar_lea.sflag [#allocation3], %s268
        %s270 = sand.u32 %s181, 1
        %s271 = smul.addr %s270, 104
        %s272 = scalar_lea.vmem [#allocation2], %s271
        %s273 = smul.u32 13, %s21
        %p274 = scmp.lt.s32.totalorder %s273, 25
        %s275 = scalar_select %p274, %s273, 25
        %s276 = smul.addr %s275, 8
        %s277 = scalar_lea.vmem %s0, %s276
        %s278 = smul.u32 13, %s21
        %s279 = smul.u32 13, %s21
        %v281 = vld [vmem:[%s277] sm:$0xff]
        %v282 = vld [vmem:[%s277 + $0x8] sm:$0xff]
        %v283 = vld [vmem:[%s277 + $0x10] sm:$0xff]
        %v284 = vld [vmem:[%s277 + $0x18] sm:$0xff]
        %v285 = vld [vmem:[%s277 + $0x20] sm:$0xff]
        %v286 = vld [vmem:[%s277 + $0x28] sm:$0xff]
        %v287 = vld [vmem:[%s277 + $0x30] sm:$0xff]
        %v288 = vld [vmem:[%s277 + $0x38] sm:$0xff]
        %v289 = vld [vmem:[%s277 + $0x40] sm:$0xff]
        %v290 = vld [vmem:[%s277 + $0x48] sm:$0xff]
        %v291 = vld [vmem:[%s277 + $0x50] sm:$0xff]
        %v292 = vld [vmem:[%s277 + $0x58] sm:$0xff]
        %v293 = vld [vmem:[%s277 + $0x60] sm:$0xff]
        %v294 = vpack.c.bf16 %v282, %v281
        %v295 = vpack.c.bf16 %v284, %v283
        %v296 = vpack.c.bf16 %v286, %v285
        %v297 = vpack.c.bf16 %v288, %v287
        %v298 = vpack.c.bf16 %v290, %v289
        %v299 = vpack.c.bf16 %v292, %v291
        %v300 = vpack.c.bf16 %v293, %v293
        %v301 = vld [vmem:[%s1] sm:$0xf]
        %v302 = vld [vmem:[%s1 + $0x4] sm:$0xf]
        %v303 = vld [vmem:[%s2] sm:$0x1]
        %v305 = vlaneseq
        %v306 = vshrl.u32 %v305, 7
        %v307 = vsub.s32 0, %v306
        %v308 = vrot.slane %v303, %v307
        %v312 = vunpack.c.l.b16 %v301
        %v313 = vunpack.c.l.b16 %v302
        %v314 = vpack.c.b16 %v313, %v312
        %vm316 = vcmask 130048
        %v318 = vsel %vm316, %v294, 0
        %v321 = vsel %vm316, %v295, 0
        %v324 = vsel %vm316, %v296, 0
        %v327 = vsel %vm316, %v297, 0
        %v330 = vsel %vm316, %v298, 0
        %v333 = vsel %vm316, %v299, 0
        %v336 = vsel %vm316, %v300, 0
        %338 = vmatprep.subr.bf16.mxu0 0
        %339 = vmatpush1.bf16.msra.mxu0 0
        %340 = vmatprep.subr.bf16.mxu0 0
        %341 = vmatpush1.bf16.msra.mxu0 0
        %342 = vmatprep.subr.bf16.mxu0 0
        %343 = vmatpush1.bf16.msra.mxu0 0
        %344 = vmatprep.subr.bf16.mxu0 0
        %345 = vmatpush1.bf16.msra.mxu0 0
        %346 = vmatprep.subr.bf16.mxu0 0
        %347 = vmatpush1.bf16.msra.mxu0 0
        %348 = vmatprep.subr.bf16.mxu0 0
        %349 = vmatpush1.bf16.msra.mxu0 0
        %350 = vmatprep.subr.bf16.mxu0 0
        %351 = vmatpush1.bf16.msra.mxu0 0
        %352 = vmatprep.subr.bf16.mxu0 0
        %353 = vmatpush1.bf16.msra.mxu0 %v314
        %354 = vmatprep.subr.bf16.mxu0 0
        %355 = vmatpush2.bf16.msra.mxu0 0
        %356 = vmatprep.subr.bf16.mxu0 0
        %357 = vmatpush2.bf16.msra.mxu0 0
        %358 = vmatprep.subr.bf16.mxu0 0
        %359 = vmatpush2.bf16.msra.mxu0 0
        %360 = vmatprep.subr.bf16.mxu0 0
        %361 = vmatpush2.bf16.msra.mxu0 0
        %362 = vmatprep.subr.bf16.mxu0 0
        %363 = vmatpush2.bf16.msra.mxu0 0
        %364 = vmatprep.subr.bf16.mxu0 0
        %365 = vmatpush2.bf16.msra.mxu0 0
        %366 = vmatprep.subr.bf16.mxu0 0
        %367 = vmatpush2.bf16.msra.mxu0 0
        %368 = vmatprep.subr.bf16.mxu0 0
        %369 = vmatpush2.bf16.msra.mxu0 0
        %370 = vmatprep.mubr.bf16.mxu0 0
        %371 = vmatmul.mubr.bf16.gmra.mxu0 %v318
        %v372 = vpop.f32.mrf.mxu0
        %v373 = vadd.f32 %v308, %v372
        %v374 = vpop.f32.mrf.mxu0
        %v375 = vpop.f32.mrf.mxu0
        %v376 = vadd.f32 %v308, %v375
        %v377 = vpop.f32.mrf.mxu0
        %378 = vmatprep.mubr.bf16.mxu0 0
        %379 = vmatmul.mubr.bf16.gmra.mxu0 %v321
        %v380 = vpop.f32.mrf.mxu0
        %v381 = vadd.f32 %v308, %v380
        %v382 = vpop.f32.mrf.mxu0
        %v383 = vpop.f32.mrf.mxu0
        %v384 = vadd.f32 %v308, %v383
        %v385 = vpop.f32.mrf.mxu0
        %386 = vmatprep.mubr.bf16.mxu0 0
        %387 = vmatmul.mubr.bf16.gmra.mxu0 %v324
        %v388 = vpop.f32.mrf.mxu0
        %v389 = vadd.f32 %v308, %v388
        %v390 = vpop.f32.mrf.mxu0
        %v391 = vpop.f32.mrf.mxu0
        %v392 = vadd.f32 %v308, %v391
        %v393 = vpop.f32.mrf.mxu0
        %394 = vmatprep.mubr.bf16.mxu0 0
        %395 = vmatmul.mubr.bf16.gmra.mxu0 %v327
        %v396 = vpop.f32.mrf.mxu0
        %v397 = vadd.f32 %v308, %v396
        %v398 = vpop.f32.mrf.mxu0
        %v399 = vpop.f32.mrf.mxu0
        %v400 = vadd.f32 %v308, %v399
        %v401 = vpop.f32.mrf.mxu0
        %402 = vmatprep.mubr.bf16.mxu0 0
        %403 = vmatmul.mubr.bf16.gmra.mxu0 %v330
        %v404 = vpop.f32.mrf.mxu0
        %v405 = vadd.f32 %v308, %v404
        %v406 = vpop.f32.mrf.mxu0
        %v407 = vpop.f32.mrf.mxu0
        %v408 = vadd.f32 %v308, %v407
        %v409 = vpop.f32.mrf.mxu0
        %410 = vmatprep.mubr.bf16.mxu0 0
        %411 = vmatmul.mubr.bf16.gmra.mxu0 %v333
        %v412 = vpop.f32.mrf.mxu0
        %v413 = vadd.f32 %v308, %v412
        %v414 = vpop.f32.mrf.mxu0
        %v415 = vpop.f32.mrf.mxu0
        %v416 = vadd.f32 %v308, %v415
        %v417 = vpop.f32.mrf.mxu0
        %418 = vmatprep.mubr.bf16.mxu0 0
        %419 = vmatmul.mubr.bf16.gmra.mxu0 %v336
        %v420 = vpop.f32.mrf.mxu0
        %v421 = vadd.f32 %v308, %v420
        %v422 = vpop.f32.mrf.mxu0
        %v423 = vpop.f32.mrf.mxu0
        %v424 = vpop.f32.mrf.mxu0
        %425 = vdwg.mxu0
        %v426 = vmax.f32 %v373, 0.0
        %v427 = vmax.f32 %v376, 0.0
        %v428 = vmax.f32 %v381, 0.0
        %v429 = vmax.f32 %v384, 0.0
        %v430 = vmax.f32 %v389, 0.0
        %v431 = vmax.f32 %v392, 0.0
        %v432 = vmax.f32 %v397, 0.0
        %v433 = vmax.f32 %v400, 0.0
        %v434 = vmax.f32 %v405, 0.0
        %v435 = vmax.f32 %v408, 0.0
        %v436 = vmax.f32 %v413, 0.0
        %v437 = vmax.f32 %v416, 0.0
        %v438 = vmax.f32 %v421, 0.0
        %v439 = vpack.c.bf16 %v427, %v426
        %v440 = vpack.c.bf16 %v429, %v428
        %v441 = vpack.c.bf16 %v431, %v430
        %v442 = vpack.c.bf16 %v433, %v432
        %v443 = vpack.c.bf16 %v435, %v434
        %v444 = vpack.c.bf16 %v437, %v436
        %v445 = vpack.c.bf16 %v438, %v438
        %v446 = vld [vmem:[%s3] sm:$0xf]
        %v447 = vld [vmem:[%s3 + $0x4] sm:$0xf]
        %v448 = vld [vmem:[%s3 + $0x8] sm:$0xf]
        %v449 = vld [vmem:[%s3 + $0xc] sm:$0xf]
        %v450 = vld [vmem:[%s3 + $0x10] sm:$0xf]
        %v451 = vld [vmem:[%s3 + $0x14] sm:$0xf]
        %v452 = vld [vmem:[%s3 + $0x18] sm:$0xf]
        %v453 = vld [vmem:[%s3 + $0x1c] sm:$0xf]
        %v454 = vld [vmem:[%s3 + $0x20] sm:$0xf]
        %v455 = vld [vmem:[%s3 + $0x24] sm:$0xf]
        %v456 = vld [vmem:[%s3 + $0x28] sm:$0xf]
        %v457 = vld [vmem:[%s3 + $0x2c] sm:$0xf]
        %v458 = vld [vmem:[%s3 + $0x30] sm:$0xf]
        %v459 = vld [vmem:[%s3 + $0x34] sm:$0xf]
        %v460 = vld [vmem:[%s3 + $0x38] sm:$0xf]
        %v461 = vld [vmem:[%s3 + $0x3c] sm:$0xf]
        %v462 = vld [vmem:[%s4] sm:$0x1]
        %v464 = vlaneseq
        %v465 = vshrl.u32 %v464, 7
        %v466 = vsub.s32 0, %v465
        %v467 = vrot.slane %v462, %v466
        %v485 = vunpack.c.l.b16 %v446
        %v486 = vunpack.c.l.b16 %v447
        %v487 = vunpack.c.l.b16 %v448
        %v488 = vunpack.c.l.b16 %v449
        %v489 = vunpack.c.l.b16 %v450
        %v490 = vunpack.c.l.b16 %v451
        %v491 = vunpack.c.l.b16 %v452
        %v492 = vunpack.c.l.b16 %v453
        %v493 = vunpack.c.l.b16 %v454
        %v494 = vunpack.c.l.b16 %v455
        %v495 = vunpack.c.l.b16 %v456
        %v496 = vunpack.c.l.b16 %v457
        %v497 = vunpack.c.l.b16 %v458
        %v498 = vunpack.c.l.b16 %v459
        %v499 = vunpack.c.l.b16 %v460
        %v500 = vunpack.c.l.b16 %v461
        %v501 = vpack.c.b16 %v486, %v485
        %v502 = vpack.c.b16 %v488, %v487
        %v503 = vpack.c.b16 %v490, %v489
        %v504 = vpack.c.b16 %v492, %v491
        %v505 = vpack.c.b16 %v494, %v493
        %v506 = vpack.c.b16 %v496, %v495
        %v507 = vpack.c.b16 %v498, %v497
        %v508 = vpack.c.b16 %v500, %v499
        %517 = vmatprep.subr.bf16.mxu0 0
        %518 = vmatpush1.bf16.msra.mxu0 %v508
        %519 = vmatprep.subr.bf16.mxu0 0
        %520 = vmatpush1.bf16.msra.mxu0 %v507
        %521 = vmatprep.subr.bf16.mxu0 0
        %522 = vmatpush1.bf16.msra.mxu0 %v506
        %523 = vmatprep.subr.bf16.mxu0 0
        %524 = vmatpush1.bf16.msra.mxu0 %v505
        %525 = vmatprep.subr.bf16.mxu0 0
        %526 = vmatpush1.bf16.msra.mxu0 %v504
        %527 = vmatprep.subr.bf16.mxu0 0
        %528 = vmatpush1.bf16.msra.mxu0 %v503
        %529 = vmatprep.subr.bf16.mxu0 0
        %530 = vmatpush1.bf16.msra.mxu0 %v502
        %531 = vmatprep.subr.bf16.mxu0 0
        %532 = vmatpush1.bf16.msra.mxu0 %v501
        %533 = vmatprep.subr.bf16.mxu0 0
        %534 = vmatpush2.bf16.msra.mxu0 0
        %535 = vmatprep.subr.bf16.mxu0 0
        %536 = vmatpush2.bf16.msra.mxu0 0
        %537 = vmatprep.subr.bf16.mxu0 0
        %538 = vmatpush2.bf16.msra.mxu0 0
        %539 = vmatprep.subr.bf16.mxu0 0
        %540 = vmatpush2.bf16.msra.mxu0 0
        %541 = vmatprep.subr.bf16.mxu0 0
        %542 = vmatpush2.bf16.msra.mxu0 0
        %543 = vmatprep.subr.bf16.mxu0 0
        %544 = vmatpush2.bf16.msra.mxu0 0
        %545 = vmatprep.subr.bf16.mxu0 0
        %546 = vmatpush2.bf16.msra.mxu0 0
        %547 = vmatprep.subr.bf16.mxu0 0
        %548 = vmatpush2.bf16.msra.mxu0 0
        %549 = vmatprep.mubr.bf16.mxu0 0
        %550 = vmatmul.mubr.bf16.gmra.mxu0 %v439
        %v551 = vpop.f32.mrf.mxu0
        %v552 = vadd.f32 %v467, %v551
        %v553 = vpop.f32.mrf.mxu0
        %v554 = vpop.f32.mrf.mxu0
        %v555 = vadd.f32 %v467, %v554
        %v556 = vpop.f32.mrf.mxu0
        %557 = vmatprep.mubr.bf16.mxu0 0
        %558 = vmatmul.mubr.bf16.gmra.mxu0 %v440
        %v559 = vpop.f32.mrf.mxu0
        %v560 = vadd.f32 %v467, %v559
        %v561 = vpop.f32.mrf.mxu0
        %v562 = vpop.f32.mrf.mxu0
        %v563 = vadd.f32 %v467, %v562
        %v564 = vpop.f32.mrf.mxu0
        %565 = vmatprep.mubr.bf16.mxu0 0
        %566 = vmatmul.mubr.bf16.gmra.mxu0 %v441
        %v567 = vpop.f32.mrf.mxu0
        %v568 = vadd.f32 %v467, %v567
        %v569 = vpop.f32.mrf.mxu0
        %v570 = vpop.f32.mrf.mxu0
        %v571 = vadd.f32 %v467, %v570
        %v572 = vpop.f32.mrf.mxu0
        %573 = vmatprep.mubr.bf16.mxu0 0
        %574 = vmatmul.mubr.bf16.gmra.mxu0 %v442
        %v575 = vpop.f32.mrf.mxu0
        %v576 = vadd.f32 %v467, %v575
        %v577 = vpop.f32.mrf.mxu0
        %v578 = vpop.f32.mrf.mxu0
        %v579 = vadd.f32 %v467, %v578
        %v580 = vpop.f32.mrf.mxu0
        %581 = vmatprep.mubr.bf16.mxu0 0
        %582 = vmatmul.mubr.bf16.gmra.mxu0 %v443
        %v583 = vpop.f32.mrf.mxu0
        %v584 = vadd.f32 %v467, %v583
        %v585 = vpop.f32.mrf.mxu0
        %v586 = vpop.f32.mrf.mxu0
        %v587 = vadd.f32 %v467, %v586
        %v588 = vpop.f32.mrf.mxu0
        %589 = vmatprep.mubr.bf16.mxu0 0
        %590 = vmatmul.mubr.bf16.gmra.mxu0 %v444
        %v591 = vpop.f32.mrf.mxu0
        %v592 = vadd.f32 %v467, %v591
        %v593 = vpop.f32.mrf.mxu0
        %v594 = vpop.f32.mrf.mxu0
        %v595 = vadd.f32 %v467, %v594
        %v596 = vpop.f32.mrf.mxu0
        %597 = vmatprep.mubr.bf16.mxu0 0
        %598 = vmatmul.mubr.bf16.gmra.mxu0 %v445
        %v599 = vpop.f32.mrf.mxu0
        %v600 = vadd.f32 %v467, %v599
        %v601 = vpop.f32.mrf.mxu0
        %v602 = vpop.f32.mrf.mxu0
        %v603 = vpop.f32.mrf.mxu0
        %604 = vdwg.mxu0
        %v605 = vmax.f32 %v552, 0.0
        %v606 = vmax.f32 %v555, 0.0
        %v607 = vmax.f32 %v560, 0.0
        %v608 = vmax.f32 %v563, 0.0
        %v609 = vmax.f32 %v568, 0.0
        %v610 = vmax.f32 %v571, 0.0
        %v611 = vmax.f32 %v576, 0.0
        %v612 = vmax.f32 %v579, 0.0
        %v613 = vmax.f32 %v584, 0.0
        %v614 = vmax.f32 %v587, 0.0
        %v615 = vmax.f32 %v592, 0.0
        %v616 = vmax.f32 %v595, 0.0
        %v617 = vmax.f32 %v600, 0.0
        %v618 = vpack.c.bf16 %v606, %v605
        %v619 = vpack.c.bf16 %v608, %v607
        %v620 = vpack.c.bf16 %v610, %v609
        %v621 = vpack.c.bf16 %v612, %v611
        %v622 = vpack.c.bf16 %v614, %v613
        %v623 = vpack.c.bf16 %v616, %v615
        %v624 = vpack.c.bf16 %v617, %v617
        %v625 = vld [vmem:[%s5] sm:$0xf]
        %v626 = vld [vmem:[%s5 + $0x4] sm:$0xf]
        %v627 = vld [vmem:[%s5 + $0x8] sm:$0xf]
        %v628 = vld [vmem:[%s5 + $0xc] sm:$0xf]
        %v629 = vld [vmem:[%s5 + $0x10] sm:$0xf]
        %v630 = vld [vmem:[%s5 + $0x14] sm:$0xf]
        %v631 = vld [vmem:[%s5 + $0x18] sm:$0xf]
        %v632 = vld [vmem:[%s5 + $0x1c] sm:$0xf]
        %v633 = vld [vmem:[%s5 + $0x20] sm:$0xf]
        %v634 = vld [vmem:[%s5 + $0x24] sm:$0xf]
        %v635 = vld [vmem:[%s5 + $0x28] sm:$0xf]
        %v636 = vld [vmem:[%s5 + $0x2c] sm:$0xf]
        %v637 = vld [vmem:[%s5 + $0x30] sm:$0xf]
        %v638 = vld [vmem:[%s5 + $0x34] sm:$0xf]
        %v639 = vld [vmem:[%s5 + $0x38] sm:$0xf]
        %v640 = vld [vmem:[%s5 + $0x3c] sm:$0xf]
        %v641 = vld [vmem:[%s6] sm:$0x1]
        %v643 = vlaneseq
        %v644 = vshrl.u32 %v643, 7
        %v645 = vsub.s32 0, %v644
        %v646 = vrot.slane %v641, %v645
        %v664 = vunpack.c.l.b16 %v625
        %v665 = vunpack.c.l.b16 %v626
        %v666 = vunpack.c.l.b16 %v627
        %v667 = vunpack.c.l.b16 %v628
        %v668 = vunpack.c.l.b16 %v629
        %v669 = vunpack.c.l.b16 %v630
        %v670 = vunpack.c.l.b16 %v631
        %v671 = vunpack.c.l.b16 %v632
        %v672 = vunpack.c.l.b16 %v633
        %v673 = vunpack.c.l.b16 %v634
        %v674 = vunpack.c.l.b16 %v635
        %v675 = vunpack.c.l.b16 %v636
        %v676 = vunpack.c.l.b16 %v637
        %v677 = vunpack.c.l.b16 %v638
        %v678 = vunpack.c.l.b16 %v639
        %v679 = vunpack.c.l.b16 %v640
        %v680 = vpack.c.b16 %v665, %v664
        %v681 = vpack.c.b16 %v667, %v666
        %v682 = vpack.c.b16 %v669, %v668
        %v683 = vpack.c.b16 %v671, %v670
        %v684 = vpack.c.b16 %v673, %v672
        %v685 = vpack.c.b16 %v675, %v674
        %v686 = vpack.c.b16 %v677, %v676
        %v687 = vpack.c.b16 %v679, %v678
        %696 = vmatprep.subr.bf16.mxu0 0
        %697 = vmatpush1.bf16.msra.mxu0 %v687
        %698 = vmatprep.subr.bf16.mxu0 0
        %699 = vmatpush1.bf16.msra.mxu0 %v686
        %700 = vmatprep.subr.bf16.mxu0 0
        %701 = vmatpush1.bf16.msra.mxu0 %v685
        %702 = vmatprep.subr.bf16.mxu0 0
        %703 = vmatpush1.bf16.msra.mxu0 %v684
        %704 = vmatprep.subr.bf16.mxu0 0
        %705 = vmatpush1.bf16.msra.mxu0 %v683
        %706 = vmatprep.subr.bf16.mxu0 0
        %707 = vmatpush1.bf16.msra.mxu0 %v682
        %708 = vmatprep.subr.bf16.mxu0 0
        %709 = vmatpush1.bf16.msra.mxu0 %v681
        %710 = vmatprep.subr.bf16.mxu0 0
        %711 = vmatpush1.bf16.msra.mxu0 %v680
        %712 = vmatprep.subr.bf16.mxu0 0
        %713 = vmatpush2.bf16.msra.mxu0 0
        %714 = vmatprep.subr.bf16.mxu0 0
        %715 = vmatpush2.bf16.msra.mxu0 0
        %716 = vmatprep.subr.bf16.mxu0 0
        %717 = vmatpush2.bf16.msra.mxu0 0
        %718 = vmatprep.subr.bf16.mxu0 0
        %719 = vmatpush2.bf16.msra.mxu0 0
        %720 = vmatprep.subr.bf16.mxu0 0
        %721 = vmatpush2.bf16.msra.mxu0 0
        %722 = vmatprep.subr.bf16.mxu0 0
        %723 = vmatpush2.bf16.msra.mxu0 0
        %724 = vmatprep.subr.bf16.mxu0 0
        %725 = vmatpush2.bf16.msra.mxu0 0
        %726 = vmatprep.subr.bf16.mxu0 0
        %727 = vmatpush2.bf16.msra.mxu0 0
        %728 = vmatprep.mubr.bf16.mxu0 0
        %729 = vmatmul.mubr.bf16.gmra.mxu0 %v618
        %v730 = vpop.f32.mrf.mxu0
        %v731 = vadd.f32 %v646, %v730
        %v732 = vpop.f32.mrf.mxu0
        %v733 = vpop.f32.mrf.mxu0
        %v734 = vadd.f32 %v646, %v733
        %v735 = vpop.f32.mrf.mxu0
        %736 = vmatprep.mubr.bf16.mxu0 0
        %737 = vmatmul.mubr.bf16.gmra.mxu0 %v619
        %v738 = vpop.f32.mrf.mxu0
        %v739 = vadd.f32 %v646, %v738
        %v740 = vpop.f32.mrf.mxu0
        %v741 = vpop.f32.mrf.mxu0
        %v742 = vadd.f32 %v646, %v741
        %v743 = vpop.f32.mrf.mxu0
        %744 = vmatprep.mubr.bf16.mxu0 0
        %745 = vmatmul.mubr.bf16.gmra.mxu0 %v620
        %v746 = vpop.f32.mrf.mxu0
        %v747 = vadd.f32 %v646, %v746
        %v748 = vpop.f32.mrf.mxu0
        %v749 = vpop.f32.mrf.mxu0
        %v750 = vadd.f32 %v646, %v749
        %v751 = vpop.f32.mrf.mxu0
        %752 = vmatprep.mubr.bf16.mxu0 0
        %753 = vmatmul.mubr.bf16.gmra.mxu0 %v621
        %v754 = vpop.f32.mrf.mxu0
        %v755 = vadd.f32 %v646, %v754
        %v756 = vpop.f32.mrf.mxu0
        %v757 = vpop.f32.mrf.mxu0
        %v758 = vadd.f32 %v646, %v757
        %v759 = vpop.f32.mrf.mxu0
        %760 = vmatprep.mubr.bf16.mxu0 0
        %761 = vmatmul.mubr.bf16.gmra.mxu0 %v622
        %v762 = vpop.f32.mrf.mxu0
        %v763 = vadd.f32 %v646, %v762
        %v764 = vpop.f32.mrf.mxu0
        %v765 = vpop.f32.mrf.mxu0
        %v766 = vadd.f32 %v646, %v765
        %v767 = vpop.f32.mrf.mxu0
        %768 = vmatprep.mubr.bf16.mxu0 0
        %769 = vmatmul.mubr.bf16.gmra.mxu0 %v623
        %v770 = vpop.f32.mrf.mxu0
        %v771 = vadd.f32 %v646, %v770
        %v772 = vpop.f32.mrf.mxu0
        %v773 = vpop.f32.mrf.mxu0
        %v774 = vadd.f32 %v646, %v773
        %v775 = vpop.f32.mrf.mxu0
        %776 = vmatprep.mubr.bf16.mxu0 0
        %777 = vmatmul.mubr.bf16.gmra.mxu0 %v624
        %v778 = vpop.f32.mrf.mxu0
        %v779 = vadd.f32 %v646, %v778
        %v780 = vpop.f32.mrf.mxu0
        %v781 = vpop.f32.mrf.mxu0
        %v782 = vpop.f32.mrf.mxu0
        %783 = vdwg.mxu0
        %v784 = vtanh.pop %v731
        %v785 = vtanh.pop %v734
        %v786 = vtanh.pop %v739
        %v787 = vtanh.pop %v742
        %v788 = vtanh.pop %v747
        %v789 = vtanh.pop %v750
        %v790 = vtanh.pop %v755
        %v791 = vtanh.pop %v758
        %v792 = vtanh.pop %v763
        %v793 = vtanh.pop %v766
        %v794 = vtanh.pop %v771
        %v795 = vtanh.pop %v774
        %v796 = vtanh.pop %v779
        %797 = vst [vmem:[%s272] sm:$0xff] %v784
        %798 = vst [vmem:[%s272 + $0x8] sm:$0xff] %v785
        %799 = vst [vmem:[%s272 + $0x10] sm:$0xff] %v786
        %800 = vst [vmem:[%s272 + $0x18] sm:$0xff] %v787
        %801 = vst [vmem:[%s272 + $0x20] sm:$0xff] %v788
        %802 = vst [vmem:[%s272 + $0x28] sm:$0xff] %v789
        %803 = vst [vmem:[%s272 + $0x30] sm:$0xff] %v790
        %804 = vst [vmem:[%s272 + $0x38] sm:$0xff] %v791
        %805 = vst [vmem:[%s272 + $0x40] sm:$0xff] %v792
        %806 = vst [vmem:[%s272 + $0x48] sm:$0xff] %v793
        %807 = vst [vmem:[%s272 + $0x50] sm:$0xff] %v794
        %808 = vst [vmem:[%s272 + $0x58] sm:$0xff] %v795
        %809 = vst [vmem:[%s272 + $0x60] sm:$0xff] %v796
        %s810 = sand.u32 %s181, 1
        %s811 = scalar_lea.sflag [#allocation3], %s810
        %s812 = sand.u32 %s181, 1
        %s813 = smul.addr %s812, 104
        %s814 = scalar_lea.vmem [#allocation2], %s813
        // Predicated region
        $region49: #{tpu_custom_call.1} parent=47 // pred_check
          %p815 = pneg %p191
        $region50: #{tpu_custom_call.1} parent=47 // pred_check_branch
          %817 = sbr.rel (%p815) target = $region52
        $region51: #{tpu_custom_call.1} parent=47 // pred_region
          %s818 = smul.u32 13, %s21
          %s820 = ssub.s32 1664, 1664
          %821 = vsyncadd %s811, %s820
          %s822 = smul.addr %s818, 128
          %s823 = scalar_lea.hbm %s7, %s822
          %s824 = sshll.u32 %s814, 4
          %s825 = int_to_ptr.vmem [resolvable:$true] %s824
          %830 = dma.vmem_to_hbm [thread:$0]  %s825, 1664, %s823, %s811, 128, 128, 8
        $region52: #{tpu_custom_call.1} parent=47 // pred_fallthru
          _
      $region48: #{tpu_custom_call.1} parent=5 // pred_fallthru
        _
      %p831 = scmp.le.s32.totalorder 2, %s16
      // Predicated region
      $region53: #{tpu_custom_call.1} parent=5 // pred_check
        %p832 = pneg %p831
      $region54: #{tpu_custom_call.1} parent=5 // pred_check_branch
        %834 = sbr.rel (%p832) target = $region56
      $region55: #{tpu_custom_call.1} parent=5 // pred_region
        %s835 = ssub.s32 %s16, 2
        // Predicated region
        $region57: #{tpu_custom_call.1} parent=55 // pred_check
          %p836 = pneg %p197
        $region58: #{tpu_custom_call.1} parent=55 // pred_check_branch
          %838 = sbr.rel (%p836) target = $region60
        $region59: #{tpu_custom_call.1} parent=55 // pred_region
          %s839 = sand.u32 %s182, 1
          %s840 = scalar_lea.sflag [#allocation3], %s839
          %s841 = sand.u32 %s182, 1
          %s842 = smul.addr %s841, 104
          %s843 = scalar_lea.vmem [#allocation2], %s842
          %844 = dma.done %s840, 1664
        $region60: #{tpu_custom_call.1} parent=55 // pred_fallthru
          _
      $region56: #{tpu_custom_call.1} parent=5 // pred_fallthru
        _
    $region6: #{tpu_custom_call.1} parent=1 // loop_footer
      %s20 = sadd.s32 1, %s16
    $region7: #{tpu_custom_call.1} parent=1 // loop_footer_branch
      %15 = sbr.rel target = $region3
    $region8: #{tpu_custom_call.1} parent=1 // loop_exit
      _
    %845 = vsyncpa [#allocation3], 1
    %s846 = scalar_lea.sflag [#allocation3], 1
    %847 = vsyncpa %s846, 1

</llo_original>
